<compile_context>
chip_gen: v5e
topology: v5e:2x2
jax: 0.10.0
libtpu: 0.0.40
codegen_flags: <defaults>
</compile_context>

<pallas_src>
import functools

import jax
import jax.numpy as jnp
from jax.experimental import pallas as pl
from jax.experimental.pallas import tpu as pltpu


def _timeblock_kernel(x_ref, w_ref, b_ref, o_ref, *, n_out):
    # One fused matmul: (3*T_out*C_out, T*C_in) @ (T*C_in, tile_R)
    res = jax.lax.dot_general(
        w_ref[...], x_ref[...],
        dimension_numbers=(((1,), (0,)), ((), ())),
        preferred_element_type=jnp.float32)
    res = res + b_ref[...]                       # (3*n_out, 1) lane-broadcast

    c1 = res[:n_out]
    c2 = res[n_out:2 * n_out]
    c3 = res[2 * n_out:]
    out = jnp.maximum(c1 + jax.nn.sigmoid(c2) + c3, 0.0)
    o_ref[...] = out.astype(o_ref.dtype)


def timeblock_forward(X, params, *, tile_lanes=1024):
    """X: (B, N, T, C_in) -> (B, N, T-K+1, C_out)."""
    (w1, b1), (w2, b2), (w3, b3) = params
    B, N, T, C_in = X.shape
    C_out, _, _, K = w1.shape                    # Conv2d weight: (C_out, C_in, 1, K)
    T_out = T - K + 1
    R = B * N
    n_in = T * C_in
    n_out = T_out * C_out

    # Lane-dense tiling: rows on lanes, tile a multiple of 128, pad remainder.
    LANE = 128
    tile_r = min(tile_lanes, -(-R // LANE) * LANE)
    tile_r = max(LANE, (tile_r // LANE) * LANE)
    R_pad = -(-R // tile_r) * tile_r

    x2d = X.reshape(R, n_in).T                   # (T*C_in, R): rows on lanes
    if R_pad != R:
        x2d = jnp.pad(x2d, ((0, 0), (0, R_pad - R)))

    # Block-banded fused weight slab (3 branches x K taps x T_out positions).
    dtype = X.dtype
    w_taps = jnp.stack(
        [jnp.transpose(w[:, :, 0, :], (2, 0, 1)) for w in (w1, w2, w3)],
        axis=0).astype(dtype)                    # (3, K, C_out, C_in)
    t_idx = jnp.arange(T_out)[:, None, None]
    k_idx = jnp.arange(K)[None, :, None]
    s_idx = jnp.arange(T)[None, None, :]
    onehot = (s_idx == t_idx + k_idx).astype(dtype)       # (T_out, K, T)
    w_big = jnp.einsum('bkoc,tks->btosc', w_taps, onehot  # (3,T_out,C_out,T,C_in)
                       ).reshape(3 * n_out, n_in)
    b_big = jnp.concatenate(
        [jnp.tile(b, T_out) for b in (b1, b2, b3)]
    ).astype(jnp.float32).reshape(3 * n_out, 1)

    kernel = functools.partial(_timeblock_kernel, n_out=n_out)

    out2d = pl.pallas_call(
        kernel,
        out_shape=jax.ShapeDtypeStruct((n_out, R_pad), X.dtype),
        grid_spec=pltpu.PrefetchScalarGridSpec(
            num_scalar_prefetch=0,
            grid=(R_pad // tile_r,),
            in_specs=[
                pl.BlockSpec((n_in, tile_r), lambda i: (0, i)),        # x tile
                pl.BlockSpec((3 * n_out, n_in), lambda i: (0, 0)),     # weights
                pl.BlockSpec((3 * n_out, 1), lambda i: (0, 0)),        # biases
            ],
            out_specs=pl.BlockSpec((n_out, tile_r), lambda i: (0, i)),
        ),
        compiler_params=pltpu.CompilerParams(
            dimension_semantics=("parallel",),
            vmem_limit_bytes=48 * 1024 * 1024),
    )(x2d, w_big, b_big)

    return out2d[:, :R].T.reshape(B, N, T_out, C_out)


def init_timeblock_params(key, in_channels, out_channels, kernel_size=3):
    """Deterministic init matching Conv2d parameter shapes."""
    keys = jax.random.split(key, 6)
    fan_in = in_channels * 1 * kernel_size
    bound = 1.0 / jnp.sqrt(fan_in)
    params = []
    for i in range(3):
        w = jax.random.uniform(keys[2 * i],
                               (out_channels, in_channels, 1, kernel_size),
                               jnp.float32, -bound, bound)
        b = jax.random.uniform(keys[2 * i + 1], (out_channels,),
                               jnp.float32, -bound, bound)
        params.append((w, b))
    return tuple(params)


def timeblock_reference(X, params):
    """Plain-JAX reference of the PyTorch forward, for validation."""
    (w1, b1), (w2, b2), (w3, b3) = params
    K = w1.shape[-1]
    T = X.shape[2]
    T_out = T - K + 1

    def conv(w, b):
        acc = 0.0
        for k in range(K):
            acc = acc + jnp.einsum('bntc,oc->bnto', X[:, :, k:k + T_out, :],
                                   w[:, :, 0, k])
        return acc + b
    c1, c2, c3 = conv(w1, b1), conv(w2, b2), conv(w3, b3)
    return jax.nn.relu(c1 + jax.nn.sigmoid(c2) + c3)


if __name__ == "__main__":
    key = jax.random.PRNGKey(0)
    k_x, k_p = jax.random.split(key)

    B, N, T, C_in, C_out, K = 2, 4, 8, 4, 8, 3
    X = jax.random.normal(k_x, (B, N, T, C_in), jnp.float32)
    params = init_timeblock_params(k_p, C_in, C_out, K)

    out = timeblock_forward(X, params)
    out = jax.block_until_ready(out)

    ref = timeblock_reference(X, params)
    assert out.shape == (B, N, T - K + 1, C_out)
    assert jnp.allclose(out, ref, atol=1e-4, rtol=1e-4)

    print("KERNEL_OK")
</pallas_src>

<mosaic_0001>
module attributes {stable_mosaic.version = 11 : i64} {
  func.func @_timeblock_kernel(%arg0: i32, %arg1: memref<32x128xf32, #tpu.memory_space<vmem>>, %arg2: memref<144x32xf32, #tpu.memory_space<vmem>>, %arg3: memref<144x1xf32, #tpu.memory_space<vmem>>, %arg4: memref<48x128xf32, #tpu.memory_space<vmem>>) attributes {dimension_semantics = [#tpu.dimension_semantics<parallel>], iteration_bounds = array<i64: 1>, scalar_prefetch = 0 : i64, scratch_operands = 0 : i64, tpu.core_type = #tpu.core_type<tc>, window_params = [{transform_indices = @transform_0, window_bounds = array<i64: 32, 128>}, {pipeline_mode = #tpu.pipeline_mode<synchronous>, transform_indices = @transform_1, window_bounds = array<i64: 144, 32>}, {pipeline_mode = #tpu.pipeline_mode<synchronous>, transform_indices = @transform_2, window_bounds = array<i64: 144, 1>}, {transform_indices = @transform_3, window_bounds = array<i64: 48, 128>}]} {
    %c0 = arith.constant 0 : index
    %c0_0 = arith.constant 0 : index
    %0 = vector.load %arg2[%c0, %c0_0] : memref<144x32xf32, #tpu.memory_space<vmem>>, vector<144x32xf32>
    %c0_1 = arith.constant 0 : index
    %c0_2 = arith.constant 0 : index
    %1 = vector.load %arg1[%c0_1, %c0_2] : memref<32x128xf32, #tpu.memory_space<vmem>>, vector<32x128xf32>
    %cst = arith.constant dense<0.000000e+00> : vector<144x128xf32>
    %2 = tpu.matmul %0, %1, %cst {dimension_numbers = #tpu.dot_dimension_numbers<[1], [0], [0], [1], [0, 0, 1, 1], [], []>} : vector<144x32xf32>, vector<32x128xf32>, vector<144x128xf32> -> vector<144x128xf32>
    %c0_3 = arith.constant 0 : index
    %c0_4 = arith.constant 0 : index
    %3 = vector.load %arg3[%c0_3, %c0_4] : memref<144x1xf32, #tpu.memory_space<vmem>>, vector<144x1xf32>
    %4 = vector.broadcast %3 : vector<144x1xf32> to vector<144x128xf32>
    %5 = arith.addf %2, %4 : vector<144x128xf32>
    %6 = vector.extract_strided_slice %5 {offsets = [0, 0], sizes = [48, 128], strides = [1, 1]} : vector<144x128xf32> to vector<48x128xf32>
    %7 = vector.extract_strided_slice %5 {offsets = [48, 0], sizes = [48, 128], strides = [1, 1]} : vector<144x128xf32> to vector<48x128xf32>
    %8 = vector.extract_strided_slice %5 {offsets = [96, 0], sizes = [48, 128], strides = [1, 1]} : vector<144x128xf32> to vector<48x128xf32>
    %9 = arith.negf %7 : vector<48x128xf32>
    %10 = math.exp %9 : vector<48x128xf32>
    %cst_5 = arith.constant 1.000000e+00 : f32
    %11 = vector.broadcast %cst_5 : f32 to vector<48x128xf32>
    %12 = arith.addf %11, %10 : vector<48x128xf32>
    %13 = arith.divf %11, %12 : vector<48x128xf32>
    %14 = arith.addf %6, %13 : vector<48x128xf32>
    %15 = arith.addf %14, %8 : vector<48x128xf32>
    %cst_6 = arith.constant 0.000000e+00 : f32
    %16 = vector.broadcast %cst_6 : f32 to vector<48x128xf32>
    %17 = arith.maximumf %15, %16 : vector<48x128xf32>
    %c0_7 = arith.constant 0 : index
    %c0_8 = arith.constant 0 : index
    %18 = vector.load %arg4[%c0_7, %c0_8] : memref<48x128xf32, #tpu.memory_space<vmem>>, vector<48x128xf32>
    tpu.vector_store %arg4[%c0_7, %c0_8], %17 {strides = array<i32>} : memref<48x128xf32, #tpu.memory_space<vmem>>, vector<48x128xf32>,
    return
  }
  func.func @transform_0(%arg0: i32) -> (i32, i32) {
    %c0_i32 = arith.constant 0 : i32
    %c0_i32_0 = arith.constant 0 : i32
    return %c0_i32, %arg0 : i32, i32
  }
  func.func @transform_1(%arg0: i32) -> (i32, i32) {
    %c0_i32 = arith.constant 0 : i32
    %c0_i32_0 = arith.constant 0 : i32
    %c0_i32_1 = arith.constant 0 : i32
    return %c0_i32, %c0_i32_0 : i32, i32
  }
  func.func @transform_2(%arg0: i32) -> (i32, i32) {
    %c0_i32 = arith.constant 0 : i32
    %c0_i32_0 = arith.constant 0 : i32
    %c0_i32_1 = arith.constant 0 : i32
    return %c0_i32, %c0_i32_0 : i32, i32
  }
  func.func @transform_3(%arg0: i32) -> (i32, i32) {
    %c0_i32 = arith.constant 0 : i32
    %c0_i32_0 = arith.constant 0 : i32
    return %c0_i32, %arg0 : i32, i32
  }
}

</mosaic_0001>

<llo_original>
// kernel: tpu_custom_call.1
$region0: #{tpu_custom_call.1}
  #allocation0 [shape = 'u32[]', space=smem, size = 0x4, offset = 0x4, fixed_abs, tag = 'smem constant byte address 0x4 - core index']
  #allocation1 [shape = 'u32[72,128]{1,0:T(1,128)}', space=vmem, size = 0x9000, scoped, tag = 'internal scratch']
  %s0 = inlined_call_operand.vmem [shape: f32[32,128], index: 0, kind: input, shape index: {}]
  %s1 = inlined_call_operand.vmem [shape: f32[144,32], index: 1, kind: input, shape index: {}]
  %s2 = inlined_call_operand.vmem [shape: f32[144,1], index: 2, kind: input, shape index: {}]
  %s3 = inlined_call_operand.hbm [shape: f32[48,128], index: 3, kind: output, shape index: {}]
  %s4 = sld [smem:[#allocation0]]
  $region22: #{tpu_custom_call.1} parent=0
    _
  %s6 = ssub.s32 1, %s4
  %s7 = scalar_select 0, %s6, %s4
  $region1: #{tpu_custom_call.1} parent=0
    #allocation2 [shape = 'u8[24576]{0}', space=vmem, size = 0x6000, scoped, tag = 'output window, operand 0, single buffered']
    #allocation3 [shape = 's32[1]{0}', space=sflag, size = 0x4, scoped, tag = 'scoped memory for tpu_custom_call.1']
    %8 = vsyncpa [#allocation3], 0
    // Predicated region
    $region2: #{tpu_custom_call.1} parent=1 // pred_check
      _
    $region3: #{tpu_custom_call.1} parent=1 // pred_check_branch
      %10 = sbr.rel (0) target = $region5
    $region4: #{tpu_custom_call.1} parent=1 // pred_region
      _
    $region5: #{tpu_custom_call.1} parent=1 // pred_fallthru
      _
    // Predicated region
    $region6: #{tpu_custom_call.1} parent=1 // pred_check
      _
    $region7: #{tpu_custom_call.1} parent=1 // pred_check_branch
      %12 = sbr.rel (0) target = $region9
    $region8: #{tpu_custom_call.1} parent=1 // pred_region
      _
    $region9: #{tpu_custom_call.1} parent=1 // pred_fallthru
      _
    // Predicated region
    $region10: #{tpu_custom_call.1} parent=1 // pred_check
      _
    $region11: #{tpu_custom_call.1} parent=1 // pred_check_branch
      %14 = sbr.rel (0) target = $region13
    $region12: #{tpu_custom_call.1} parent=1 // pred_region
      _
    $region13: #{tpu_custom_call.1} parent=1 // pred_fallthru
      _
    %v15 = vld [vmem:[%s1] sm:$0xff]
    %v16 = vld [vmem:[%s1 + $0x8] sm:$0xff]
    %v17 = vld [vmem:[%s1 + $0x10] sm:$0xff]
    %v18 = vld [vmem:[%s1 + $0x18] sm:$0xff]
    %v19 = vld [vmem:[%s1 + $0x20] sm:$0xff]
    %v20 = vld [vmem:[%s1 + $0x28] sm:$0xff]
    %v21 = vld [vmem:[%s1 + $0x30] sm:$0xff]
    %v22 = vld [vmem:[%s1 + $0x38] sm:$0xff]
    %v23 = vld [vmem:[%s1 + $0x40] sm:$0xff]
    %v24 = vld [vmem:[%s1 + $0x48] sm:$0xff]
    %v25 = vld [vmem:[%s1 + $0x50] sm:$0xff]
    %v26 = vld [vmem:[%s1 + $0x58] sm:$0xff]
    %v27 = vld [vmem:[%s1 + $0x60] sm:$0xff]
    %v28 = vld [vmem:[%s1 + $0x68] sm:$0xff]
    %v29 = vld [vmem:[%s1 + $0x70] sm:$0xff]
    %v30 = vld [vmem:[%s1 + $0x78] sm:$0xff]
    %v31 = vld [vmem:[%s1 + $0x80] sm:$0xff]
    %v32 = vld [vmem:[%s1 + $0x88] sm:$0xff]
    %v33 = vld [vmem:[%s0] sm:$0xff]
    %v34 = vld [vmem:[%s0 + $0x8] sm:$0xff]
    %v35 = vld [vmem:[%s0 + $0x10] sm:$0xff]
    %v36 = vld [vmem:[%s0 + $0x18] sm:$0xff]
    %v37 = vld [vmem:[%s2] sm:$0xff]
    %v38 = vld [vmem:[%s2 + $0x8] sm:$0xff]
    %v39 = vld [vmem:[%s2 + $0x10] sm:$0xff]
    %v40 = vld [vmem:[%s2 + $0x18] sm:$0xff]
    %v41 = vld [vmem:[%s2 + $0x20] sm:$0xff]
    %v42 = vld [vmem:[%s2 + $0x28] sm:$0xff]
    %v43 = vld [vmem:[%s2 + $0x30] sm:$0xff]
    %v44 = vld [vmem:[%s2 + $0x38] sm:$0xff]
    %v45 = vld [vmem:[%s2 + $0x40] sm:$0xff]
    %v46 = vld [vmem:[%s2 + $0x48] sm:$0xff]
    %v47 = vld [vmem:[%s2 + $0x50] sm:$0xff]
    %v48 = vld [vmem:[%s2 + $0x58] sm:$0xff]
    %v49 = vld [vmem:[%s2 + $0x60] sm:$0xff]
    %v50 = vld [vmem:[%s2 + $0x68] sm:$0xff]
    %v51 = vld [vmem:[%s2 + $0x70] sm:$0xff]
    %v52 = vld [vmem:[%s2 + $0x78] sm:$0xff]
    %v53 = vld [vmem:[%s2 + $0x80] sm:$0xff]
    %v54 = vld [vmem:[%s2 + $0x88] sm:$0xff]
    %56 = vset.pattern.permute.xlu0 0
    %57 = vperm.xlu0 %56, %v37
    %v58 = vpop.permute.xlu0 %57
    %61 = vset.pattern.permute.xlu0 0
    %62 = vperm.xlu0 %61, %v38
    %v63 = vpop.permute.xlu0 %62
    %66 = vset.pattern.permute.xlu0 0
    %67 = vperm.xlu0 %66, %v39
    %v68 = vpop.permute.xlu0 %67
    %71 = vset.pattern.permute.xlu0 0
    %72 = vperm.xlu0 %71, %v40
    %v73 = vpop.permute.xlu0 %72
    %76 = vset.pattern.permute.xlu0 0
    %77 = vperm.xlu0 %76, %v41
    %v78 = vpop.permute.xlu0 %77
    %81 = vset.pattern.permute.xlu0 0
    %82 = vperm.xlu0 %81, %v42
    %v83 = vpop.permute.xlu0 %82
    %86 = vset.pattern.permute.xlu0 0
    %87 = vperm.xlu0 %86, %v43
    %v88 = vpop.permute.xlu0 %87
    %91 = vset.pattern.permute.xlu0 0
    %92 = vperm.xlu0 %91, %v44
    %v93 = vpop.permute.xlu0 %92
    %96 = vset.pattern.permute.xlu0 0
    %97 = vperm.xlu0 %96, %v45
    %v98 = vpop.permute.xlu0 %97
    %101 = vset.pattern.permute.xlu0 0
    %102 = vperm.xlu0 %101, %v46
    %v103 = vpop.permute.xlu0 %102
    %106 = vset.pattern.permute.xlu0 0
    %107 = vperm.xlu0 %106, %v47
    %v108 = vpop.permute.xlu0 %107
    %111 = vset.pattern.permute.xlu0 0
    %112 = vperm.xlu0 %111, %v48
    %v113 = vpop.permute.xlu0 %112
    %116 = vset.pattern.permute.xlu0 0
    %117 = vperm.xlu0 %116, %v49
    %v118 = vpop.permute.xlu0 %117
    %121 = vset.pattern.permute.xlu0 0
    %122 = vperm.xlu0 %121, %v50
    %v123 = vpop.permute.xlu0 %122
    %126 = vset.pattern.permute.xlu0 0
    %127 = vperm.xlu0 %126, %v51
    %v128 = vpop.permute.xlu0 %127
    %131 = vset.pattern.permute.xlu0 0
    %132 = vperm.xlu0 %131, %v52
    %v133 = vpop.permute.xlu0 %132
    %136 = vset.pattern.permute.xlu0 0
    %137 = vperm.xlu0 %136, %v53
    %v138 = vpop.permute.xlu0 %137
    %141 = vset.pattern.permute.xlu0 0
    %142 = vperm.xlu0 %141, %v54
    %v143 = vpop.permute.xlu0 %142
    %vm145 = vcmask 261120
    %v147 = vsel %vm145, %v15, 0
    %v150 = vsel %vm145, %v16, 0
    %v153 = vsel %vm145, %v17, 0
    %v156 = vsel %vm145, %v18, 0
    %v159 = vsel %vm145, %v19, 0
    %v162 = vsel %vm145, %v20, 0
    %v165 = vsel %vm145, %v21, 0
    %v168 = vsel %vm145, %v22, 0
    %v171 = vsel %vm145, %v23, 0
    %v174 = vsel %vm145, %v24, 0
    %v177 = vsel %vm145, %v25, 0
    %v180 = vsel %vm145, %v26, 0
    %v183 = vsel %vm145, %v27, 0
    %v186 = vsel %vm145, %v28, 0
    %v189 = vsel %vm145, %v29, 0
    %v192 = vsel %vm145, %v30, 0
    %v195 = vsel %vm145, %v31, 0
    %v198 = vsel %vm145, %v32, 0
    %200 = vmatpush.msra.mxu0 0.0
    %201 = vmatpush.msra.mxu0 0.0
    %202 = vmatpush.msra.mxu0 0.0
    %203 = vmatpush.msra.mxu0 0.0
    %204 = vmatpush.msra.mxu0 0.0
    %205 = vmatpush.msra.mxu0 0.0
    %206 = vmatpush.msra.mxu0 0.0
    %207 = vmatpush.msra.mxu0 0.0
    %208 = vmatpush.msra.mxu0 0.0
    %209 = vmatpush.msra.mxu0 0.0
    %210 = vmatpush.msra.mxu0 0.0
    %211 = vmatpush.msra.mxu0 0.0
    %212 = vmatpush.msra.mxu0 %v36
    %213 = vmatpush.msra.mxu0 %v35
    %214 = vmatpush.msra.mxu0 %v34
    %215 = vmatpush.msra.mxu0 %v33
    %216 = vmatmul.f32.gmra.mxu0 %v147
    %v217 = vpop.f32.mrf.mxu0
    %v218 = vadd.f32 %v58, %v217
    %219 = vmatmul.f32.gmra.mxu0 %v150
    %v220 = vpop.f32.mrf.mxu0
    %v221 = vadd.f32 %v63, %v220
    %222 = vmatmul.f32.gmra.mxu0 %v153
    %v223 = vpop.f32.mrf.mxu0
    %v224 = vadd.f32 %v68, %v223
    %225 = vmatmul.f32.gmra.mxu0 %v156
    %v226 = vpop.f32.mrf.mxu0
    %v227 = vadd.f32 %v73, %v226
    %228 = vmatmul.f32.gmra.mxu0 %v159
    %v229 = vpop.f32.mrf.mxu0
    %v230 = vadd.f32 %v78, %v229
    %231 = vmatmul.f32.gmra.mxu0 %v162
    %v232 = vpop.f32.mrf.mxu0
    %v233 = vadd.f32 %v83, %v232
    %234 = vmatmul.f32.gmra.mxu0 %v165
    %v235 = vpop.f32.mrf.mxu0
    %v236 = vadd.f32 %v88, %v235
    %237 = vmatmul.f32.gmra.mxu0 %v168
    %v238 = vpop.f32.mrf.mxu0
    %v239 = vadd.f32 %v93, %v238
    %240 = vmatmul.f32.gmra.mxu0 %v171
    %v241 = vpop.f32.mrf.mxu0
    %v242 = vadd.f32 %v98, %v241
    %243 = vmatmul.f32.gmra.mxu0 %v174
    %v244 = vpop.f32.mrf.mxu0
    %v245 = vadd.f32 %v103, %v244
    %246 = vmatmul.f32.gmra.mxu0 %v177
    %v247 = vpop.f32.mrf.mxu0
    %v248 = vadd.f32 %v108, %v247
    %249 = vmatmul.f32.gmra.mxu0 %v180
    %v250 = vpop.f32.mrf.mxu0
    %v251 = vadd.f32 %v113, %v250
    %252 = vmatmul.f32.gmra.mxu0 %v183
    %v253 = vpop.f32.mrf.mxu0
    %v254 = vadd.f32 %v118, %v253
    %255 = vmatmul.f32.gmra.mxu0 %v186
    %v256 = vpop.f32.mrf.mxu0
    %v257 = vadd.f32 %v123, %v256
    %258 = vmatmul.f32.gmra.mxu0 %v189
    %v259 = vpop.f32.mrf.mxu0
    %v260 = vadd.f32 %v128, %v259
    %261 = vmatmul.f32.gmra.mxu0 %v192
    %v262 = vpop.f32.mrf.mxu0
    %v263 = vadd.f32 %v133, %v262
    %264 = vmatmul.f32.gmra.mxu0 %v195
    %v265 = vpop.f32.mrf.mxu0
    %v266 = vadd.f32 %v138, %v265
    %267 = vmatmul.f32.gmra.mxu0 %v198
    %v268 = vpop.f32.mrf.mxu0
    %v269 = vadd.f32 %v143, %v268
    %270 = vdwg.mxu0
    %v271 = vxor.u32 %v236, 2147483648
    %v272 = vxor.u32 %v239, 2147483648
    %v273 = vxor.u32 %v242, 2147483648
    %v274 = vxor.u32 %v245, 2147483648
    %v275 = vxor.u32 %v248, 2147483648
    %v276 = vxor.u32 %v251, 2147483648
    %v277 = vmul.f32 %v271, 1.442695
    %v278 = vpow.pop %v277
    %v279 = vmul.f32 %v272, 1.442695
    %v280 = vpow.pop %v279
    %v281 = vmul.f32 %v273, 1.442695
    %v282 = vpow.pop %v281
    %v283 = vmul.f32 %v274, 1.442695
    %v284 = vpow.pop %v283
    %v285 = vmul.f32 %v275, 1.442695
    %v286 = vpow.pop %v285
    %v287 = vmul.f32 %v276, 1.442695
    %v288 = vpow.pop %v287
    %v289 = vadd.f32 %v278, 1.0
    %v290 = vadd.f32 %v280, 1.0
    %v291 = vadd.f32 %v282, 1.0
    %v292 = vadd.f32 %v284, 1.0
    %v293 = vadd.f32 %v286, 1.0
    %v294 = vadd.f32 %v288, 1.0
    %v295 = vrcp.pop %v289
    %v296 = vmul.f32 %v289, %v295
    %v297 = vsub.f32 1.0, %v296
    %v298 = vmul.f32 %v295, %v297
    %v299 = vadd.f32 %v295, %v298
    %vm300 = vweird.f32 %v289
    %vm301 = vweird.f32 %v295
    %vm302 = vmor %vm300, %vm301
    %v303 = vsel %vm302, %v295, %v299
    %v304 = vand.u32 2147483647, %v289
    %vm305 = vcmp.eq.f32.partialorder %v304, 8.507059e+37
    %v306 = vand.u32 %v289, 2147483648
    %v307 = vor.u32 1.1754944e-38, %v306
    %v308 = vsel %vm305, %v307, %v303
    %v309 = vmul.f32 1.0, %v308
    %v310 = vrcp.pop %v290
    %v311 = vmul.f32 %v290, %v310
    %v312 = vsub.f32 1.0, %v311
    %v313 = vmul.f32 %v310, %v312
    %v314 = vadd.f32 %v310, %v313
    %vm315 = vweird.f32 %v290
    %vm316 = vweird.f32 %v310
    %vm317 = vmor %vm315, %vm316
    %v318 = vsel %vm317, %v310, %v314
    %v319 = vand.u32 2147483647, %v290
    %vm320 = vcmp.eq.f32.partialorder %v319, 8.507059e+37
    %v321 = vand.u32 %v290, 2147483648
    %v322 = vor.u32 1.1754944e-38, %v321
    %v323 = vsel %vm320, %v322, %v318
    %v324 = vmul.f32 1.0, %v323
    %v325 = vrcp.pop %v291
    %v326 = vmul.f32 %v291, %v325
    %v327 = vsub.f32 1.0, %v326
    %v328 = vmul.f32 %v325, %v327
    %v329 = vadd.f32 %v325, %v328
    %vm330 = vweird.f32 %v291
    %vm331 = vweird.f32 %v325
    %vm332 = vmor %vm330, %vm331
    %v333 = vsel %vm332, %v325, %v329
    %v334 = vand.u32 2147483647, %v291
    %vm335 = vcmp.eq.f32.partialorder %v334, 8.507059e+37
    %v336 = vand.u32 %v291, 2147483648
    %v337 = vor.u32 1.1754944e-38, %v336
    %v338 = vsel %vm335, %v337, %v333
    %v339 = vmul.f32 1.0, %v338
    %v340 = vrcp.pop %v292
    %v341 = vmul.f32 %v292, %v340
    %v342 = vsub.f32 1.0, %v341
    %v343 = vmul.f32 %v340, %v342
    %v344 = vadd.f32 %v340, %v343
    %vm345 = vweird.f32 %v292
    %vm346 = vweird.f32 %v340
    %vm347 = vmor %vm345, %vm346
    %v348 = vsel %vm347, %v340, %v344
    %v349 = vand.u32 2147483647, %v292
    %vm350 = vcmp.eq.f32.partialorder %v349, 8.507059e+37
    %v351 = vand.u32 %v292, 2147483648
    %v352 = vor.u32 1.1754944e-38, %v351
    %v353 = vsel %vm350, %v352, %v348
    %v354 = vmul.f32 1.0, %v353
    %v355 = vrcp.pop %v293
    %v356 = vmul.f32 %v293, %v355
    %v357 = vsub.f32 1.0, %v356
    %v358 = vmul.f32 %v355, %v357
    %v359 = vadd.f32 %v355, %v358
    %vm360 = vweird.f32 %v293
    %vm361 = vweird.f32 %v355
    %vm362 = vmor %vm360, %vm361
    %v363 = vsel %vm362, %v355, %v359
    %v364 = vand.u32 2147483647, %v293
    %vm365 = vcmp.eq.f32.partialorder %v364, 8.507059e+37
    %v366 = vand.u32 %v293, 2147483648
    %v367 = vor.u32 1.1754944e-38, %v366
    %v368 = vsel %vm365, %v367, %v363
    %v369 = vmul.f32 1.0, %v368
    %v370 = vrcp.pop %v294
    %v371 = vmul.f32 %v294, %v370
    %v372 = vsub.f32 1.0, %v371
    %v373 = vmul.f32 %v370, %v372
    %v374 = vadd.f32 %v370, %v373
    %vm375 = vweird.f32 %v294
    %vm376 = vweird.f32 %v370
    %vm377 = vmor %vm375, %vm376
    %v378 = vsel %vm377, %v370, %v374
    %v379 = vand.u32 2147483647, %v294
    %vm380 = vcmp.eq.f32.partialorder %v379, 8.507059e+37
    %v381 = vand.u32 %v294, 2147483648
    %v382 = vor.u32 1.1754944e-38, %v381
    %v383 = vsel %vm380, %v382, %v378
    %v384 = vmul.f32 1.0, %v383
    %v385 = vadd.f32 %v218, %v309
    %v386 = vadd.f32 %v221, %v324
    %v387 = vadd.f32 %v224, %v339
    %v388 = vadd.f32 %v227, %v354
    %v389 = vadd.f32 %v230, %v369
    %v390 = vadd.f32 %v233, %v384
    %v391 = vadd.f32 %v385, %v254
    %v392 = vadd.f32 %v386, %v257
    %v393 = vadd.f32 %v387, %v260
    %v394 = vadd.f32 %v388, %v263
    %v395 = vadd.f32 %v389, %v266
    %v396 = vadd.f32 %v390, %v269
    %v397 = vmax.f32 %v391, 0.0
    %v398 = vmax.f32 %v392, 0.0
    %v399 = vmax.f32 %v393, 0.0
    %v400 = vmax.f32 %v394, 0.0
    %v401 = vmax.f32 %v395, 0.0
    %v402 = vmax.f32 %v396, 0.0
    %403 = vst [vmem:[#allocation2] sm:$0xff] %v397
    %404 = vst [vmem:[#allocation2 + $0x8] sm:$0xff] %v398
    %405 = vst [vmem:[#allocation2 + $0x10] sm:$0xff] %v399
    %406 = vst [vmem:[#allocation2 + $0x18] sm:$0xff] %v400
    %407 = vst [vmem:[#allocation2 + $0x20] sm:$0xff] %v401
    %408 = vst [vmem:[#allocation2 + $0x28] sm:$0xff] %v402
    // Predicated region
    $region14: #{tpu_custom_call.1} parent=1 // pred_check
      _
    $region15: #{tpu_custom_call.1} parent=1 // pred_check_branch
      %410 = sbr.rel (0) target = $region17
    $region16: #{tpu_custom_call.1} parent=1 // pred_region
      %412 = vsyncadd [#allocation3], 0
      %s413 = sshll.u32 [#allocation2], 4
      %s414 = int_to_ptr.vmem [resolvable:$true] %s413
      %s415 = sshll.u32 %s3, 4
      %s416 = int_to_ptr.hbm [resolvable:$true] %s415
      %421 = dma.vmem_to_hbm [thread:$0]  %s414, 768, %s416, [#allocation3], 128, 128, 8
    $region17: #{tpu_custom_call.1} parent=1 // pred_fallthru
      _
    // Predicated region
    $region18: #{tpu_custom_call.1} parent=1 // pred_check
      _
    $region19: #{tpu_custom_call.1} parent=1 // pred_check_branch
      %423 = sbr.rel (0) target = $region21
    $region20: #{tpu_custom_call.1} parent=1 // pred_region
      %425 = dma.done [#allocation3], 768
    $region21: #{tpu_custom_call.1} parent=1 // pred_fallthru
      _
    %426 = vsyncpa [#allocation3], 1

</llo_original>
